<compile_context>
chip_gen: v7x
topology: tpu7x:2x2x1
jax: 0.10.0
libtpu: 0.0.40
codegen_flags: <defaults>
</compile_context>

<pallas_src>
import jax
import jax.numpy as jnp
from jax import lax
from jax.experimental import pallas as pl
from jax.experimental.pallas import tpu as pltpu

EPS = 1e-5
K = 3  # conv kernel size


def conv_bn_kernel(w_ref, x_ref, out_ref, xpad_ref):
    # w_ref:    SMEM (27,)            flattened (kd, kh, kw) conv taps
    # x_ref:    VMEM (D, H, W)        raw input volume
    # out_ref:  VMEM (D, H, W)
    # xpad_ref: VMEM (D+2, H+2, W+2)  scratch: zero-padded volume
    D, H, W = out_ref.shape

    # --- Fused zero padding: zero the scratch, store the volume at (1,1,1) ---
    xpad_ref[...] = jnp.zeros_like(xpad_ref)
    xpad_ref[pl.ds(1, D), pl.ds(1, H), pl.ds(1, W)] = x_ref[...]

    # Single hoisted load; every window below is an in-register value slice.
    xp = xpad_ref[...]

    # --- Conv3d, stride 1: 27 shifted taps, accumulator seeded by tap 0 ------
    acc = xp[0:D, 0:H, 0:W] * w_ref[0]
    for kd in range(K):
        for kh in range(K):
            for kw in range(K):
                if kd == 0 and kh == 0 and kw == 0:
                    continue
                tap = w_ref[kd * K * K + kh * K + kw]
                acc = acc + xp[kd:kd + D, kh:kh + H, kw:kw + W] * tap
    # Conv bias intentionally omitted: cancelled exactly by the BN mean
    # subtraction and has no effect on the variance.

    # --- BatchNorm (training mode, single channel): one-pass mean/var --------
    inv_n = 1.0 / float(D * H * W)
    s = jnp.sum(acc)
    ssq = jnp.sum(acc * acc)
    mean = s * inv_n
    var = jnp.maximum(ssq * inv_n - mean * mean, 0.0)  # biased var, clamped
    out_ref[...] = (acc - mean) * lax.rsqrt(var + EPS)  # gamma=1, beta=0


@jax.jit
def conv3d_bn(x, w, b):
    # x: (N, C, D, H, W) with N = C = 1, float32.
    # b (conv bias) is accepted for interface fidelity but unused: it cancels
    # exactly in the batch-norm output.
    del b
    N, C, D, H, W = x.shape
    assert N == 1 and C == 1
    out = pl.pallas_call(
        conv_bn_kernel,
        out_shape=jax.ShapeDtypeStruct((D, H, W), jnp.float32),
        in_specs=[
            pl.BlockSpec(memory_space=pltpu.MemorySpace.SMEM),  # conv taps
            pl.BlockSpec(memory_space=pltpu.MemorySpace.VMEM),  # raw volume
        ],
        out_specs=pl.BlockSpec(memory_space=pltpu.MemorySpace.VMEM),
        scratch_shapes=[pltpu.VMEM((D + 2, H + 2, W + 2), jnp.float32)],
    )(
        w.reshape(K * K * K).astype(jnp.float32),
        x.reshape(D, H, W).astype(jnp.float32),
    )
    return out.reshape(1, 1, D, H, W)


def reference(x, w, b):
    # Pure-JAX reference (with bias, to check the cancellation claim too).
    y = lax.conv_general_dilated(
        x, w.reshape(1, 1, K, K, K),
        window_strides=(1, 1, 1),
        padding=((1, 1), (1, 1), (1, 1)),
        dimension_numbers=("NCDHW", "OIDHW", "NCDHW"),
    ) + b[0]
    mean = jnp.mean(y)
    var = jnp.mean((y - mean) ** 2)
    return (y - mean) * lax.rsqrt(var + EPS)


if __name__ == "__main__":
    key = jax.random.PRNGKey(0)
    kx, kw, kb = jax.random.split(key, 3)

    # Input matching the PyTorch script: torch.randn(1, 1, 6, 6, 6)
    x = jax.random.normal(kx, (1, 1, 6, 6, 6), dtype=jnp.float32)

    # Deterministic Conv3d(1, 1, 3) parameter init (PyTorch-style uniform bound).
    bound = 1.0 / (K * K * K) ** 0.5
    w = jax.random.uniform(kw, (1, 1, K, K, K), jnp.float32, -bound, bound)
    b = jax.random.uniform(kb, (1,), jnp.float32, -bound, bound)

    out = jax.block_until_ready(conv3d_bn(x, w, b))

    ref = reference(x, w, b)
    assert out.shape == (1, 1, 6, 6, 6)
    assert jnp.allclose(out, ref, atol=1e-4, rtol=1e-4), "mismatch vs reference"

    print("KERNEL_OK")
</pallas_src>

<mosaic_0001>
module attributes {stable_mosaic.version = 11 : i64} {
  func.func @conv_bn_kernel(%arg0: memref<27xf32, #tpu.memory_space<smem>>, %arg1: memref<6x6x6xf32, #tpu.memory_space<vmem>>, %arg2: memref<6x6x6xf32, #tpu.memory_space<vmem>>, %arg3: memref<8x8x8xf32, #tpu.memory_space<vmem>>) attributes {dimension_semantics = [], scalar_prefetch = 0 : i64, scratch_operands = 1 : i64, tpu.core_type = #tpu.core_type<tc>} {
    %cst = arith.constant 0.000000e+00 : f32
    %0 = vector.broadcast %cst : f32 to vector<8x8x8xf32>
    %c0 = arith.constant 0 : index
    %c0_0 = arith.constant 0 : index
    %c0_1 = arith.constant 0 : index
    %1 = vector.load %arg3[%c0, %c0_0, %c0_1] : memref<8x8x8xf32, #tpu.memory_space<vmem>>, vector<8x8x8xf32>
    tpu.vector_store %arg3[%c0, %c0_0, %c0_1], %0 {strides = array<i32>} : memref<8x8x8xf32, #tpu.memory_space<vmem>>, vector<8x8x8xf32>,
    %c0_2 = arith.constant 0 : index
    %c0_3 = arith.constant 0 : index
    %c0_4 = arith.constant 0 : index
    %2 = vector.load %arg1[%c0_2, %c0_3, %c0_4] : memref<6x6x6xf32, #tpu.memory_space<vmem>>, vector<6x6x6xf32>
    %c1 = arith.constant 1 : index
    %c1_5 = arith.constant 1 : index
    %c1_6 = arith.constant 1 : index
    %3 = vector.load %arg3[%c1, %c1_5, %c1_6] : memref<8x8x8xf32, #tpu.memory_space<vmem>>, vector<6x6x6xf32>
    tpu.vector_store %arg3[%c1, %c1_5, %c1_6], %2 {strides = array<i32>} : memref<8x8x8xf32, #tpu.memory_space<vmem>>, vector<6x6x6xf32>,
    %c0_7 = arith.constant 0 : index
    %c0_8 = arith.constant 0 : index
    %c0_9 = arith.constant 0 : index
    %4 = vector.load %arg3[%c0_7, %c0_8, %c0_9] : memref<8x8x8xf32, #tpu.memory_space<vmem>>, vector<8x8x8xf32>
    %5 = vector.extract_strided_slice %4 {offsets = [0, 0, 0], sizes = [6, 6, 6], strides = [1, 1, 1]} : vector<8x8x8xf32> to vector<6x6x6xf32>
    %c0_10 = arith.constant 0 : index
    %6 = memref.load %arg0[%c0_10] : memref<27xf32, #tpu.memory_space<smem>>
    %7 = vector.broadcast %6 : f32 to vector<6x6x6xf32>
    %8 = arith.mulf %5, %7 : vector<6x6x6xf32>
    %c1_11 = arith.constant 1 : index
    %9 = memref.load %arg0[%c1_11] : memref<27xf32, #tpu.memory_space<smem>>
    %10 = vector.extract_strided_slice %4 {offsets = [0, 0, 1], sizes = [6, 6, 6], strides = [1, 1, 1]} : vector<8x8x8xf32> to vector<6x6x6xf32>
    %11 = vector.broadcast %9 : f32 to vector<6x6x6xf32>
    %12 = arith.mulf %10, %11 : vector<6x6x6xf32>
    %13 = arith.addf %8, %12 : vector<6x6x6xf32>
    %c2 = arith.constant 2 : index
    %14 = memref.load %arg0[%c2] : memref<27xf32, #tpu.memory_space<smem>>
    %15 = vector.extract_strided_slice %4 {offsets = [0, 0, 2], sizes = [6, 6, 6], strides = [1, 1, 1]} : vector<8x8x8xf32> to vector<6x6x6xf32>
    %16 = vector.broadcast %14 : f32 to vector<6x6x6xf32>
    %17 = arith.mulf %15, %16 : vector<6x6x6xf32>
    %18 = arith.addf %13, %17 : vector<6x6x6xf32>
    %c3 = arith.constant 3 : index
    %19 = memref.load %arg0[%c3] : memref<27xf32, #tpu.memory_space<smem>>
    %20 = vector.extract_strided_slice %4 {offsets = [0, 1, 0], sizes = [6, 6, 6], strides = [1, 1, 1]} : vector<8x8x8xf32> to vector<6x6x6xf32>
    %21 = vector.broadcast %19 : f32 to vector<6x6x6xf32>
    %22 = arith.mulf %20, %21 : vector<6x6x6xf32>
    %23 = arith.addf %18, %22 : vector<6x6x6xf32>
    %c4 = arith.constant 4 : index
    %24 = memref.load %arg0[%c4] : memref<27xf32, #tpu.memory_space<smem>>
    %25 = vector.extract_strided_slice %4 {offsets = [0, 1, 1], sizes = [6, 6, 6], strides = [1, 1, 1]} : vector<8x8x8xf32> to vector<6x6x6xf32>
    %26 = vector.broadcast %24 : f32 to vector<6x6x6xf32>
    %27 = arith.mulf %25, %26 : vector<6x6x6xf32>
    %28 = arith.addf %23, %27 : vector<6x6x6xf32>
    %c5 = arith.constant 5 : index
    %29 = memref.load %arg0[%c5] : memref<27xf32, #tpu.memory_space<smem>>
    %30 = vector.extract_strided_slice %4 {offsets = [0, 1, 2], sizes = [6, 6, 6], strides = [1, 1, 1]} : vector<8x8x8xf32> to vector<6x6x6xf32>
    %31 = vector.broadcast %29 : f32 to vector<6x6x6xf32>
    %32 = arith.mulf %30, %31 : vector<6x6x6xf32>
    %33 = arith.addf %28, %32 : vector<6x6x6xf32>
    %c6 = arith.constant 6 : index
    %34 = memref.load %arg0[%c6] : memref<27xf32, #tpu.memory_space<smem>>
    %35 = vector.extract_strided_slice %4 {offsets = [0, 2, 0], sizes = [6, 6, 6], strides = [1, 1, 1]} : vector<8x8x8xf32> to vector<6x6x6xf32>
    %36 = vector.broadcast %34 : f32 to vector<6x6x6xf32>
    %37 = arith.mulf %35, %36 : vector<6x6x6xf32>
    %38 = arith.addf %33, %37 : vector<6x6x6xf32>
    %c7 = arith.constant 7 : index
    %39 = memref.load %arg0[%c7] : memref<27xf32, #tpu.memory_space<smem>>
    %40 = vector.extract_strided_slice %4 {offsets = [0, 2, 1], sizes = [6, 6, 6], strides = [1, 1, 1]} : vector<8x8x8xf32> to vector<6x6x6xf32>
    %41 = vector.broadcast %39 : f32 to vector<6x6x6xf32>
    %42 = arith.mulf %40, %41 : vector<6x6x6xf32>
    %43 = arith.addf %38, %42 : vector<6x6x6xf32>
    %c8 = arith.constant 8 : index
    %44 = memref.load %arg0[%c8] : memref<27xf32, #tpu.memory_space<smem>>
    %45 = vector.extract_strided_slice %4 {offsets = [0, 2, 2], sizes = [6, 6, 6], strides = [1, 1, 1]} : vector<8x8x8xf32> to vector<6x6x6xf32>
    %46 = vector.broadcast %44 : f32 to vector<6x6x6xf32>
    %47 = arith.mulf %45, %46 : vector<6x6x6xf32>
    %48 = arith.addf %43, %47 : vector<6x6x6xf32>
    %c9 = arith.constant 9 : index
    %49 = memref.load %arg0[%c9] : memref<27xf32, #tpu.memory_space<smem>>
    %50 = vector.extract_strided_slice %4 {offsets = [1, 0, 0], sizes = [6, 6, 6], strides = [1, 1, 1]} : vector<8x8x8xf32> to vector<6x6x6xf32>
    %51 = vector.broadcast %49 : f32 to vector<6x6x6xf32>
    %52 = arith.mulf %50, %51 : vector<6x6x6xf32>
    %53 = arith.addf %48, %52 : vector<6x6x6xf32>
    %c10 = arith.constant 10 : index
    %54 = memref.load %arg0[%c10] : memref<27xf32, #tpu.memory_space<smem>>
    %55 = vector.extract_strided_slice %4 {offsets = [1, 0, 1], sizes = [6, 6, 6], strides = [1, 1, 1]} : vector<8x8x8xf32> to vector<6x6x6xf32>
    %56 = vector.broadcast %54 : f32 to vector<6x6x6xf32>
    %57 = arith.mulf %55, %56 : vector<6x6x6xf32>
    %58 = arith.addf %53, %57 : vector<6x6x6xf32>
    %c11 = arith.constant 11 : index
    %59 = memref.load %arg0[%c11] : memref<27xf32, #tpu.memory_space<smem>>
    %60 = vector.extract_strided_slice %4 {offsets = [1, 0, 2], sizes = [6, 6, 6], strides = [1, 1, 1]} : vector<8x8x8xf32> to vector<6x6x6xf32>
    %61 = vector.broadcast %59 : f32 to vector<6x6x6xf32>
    %62 = arith.mulf %60, %61 : vector<6x6x6xf32>
    %63 = arith.addf %58, %62 : vector<6x6x6xf32>
    %c12 = arith.constant 12 : index
    %64 = memref.load %arg0[%c12] : memref<27xf32, #tpu.memory_space<smem>>
    %65 = vector.extract_strided_slice %4 {offsets = [1, 1, 0], sizes = [6, 6, 6], strides = [1, 1, 1]} : vector<8x8x8xf32> to vector<6x6x6xf32>
    %66 = vector.broadcast %64 : f32 to vector<6x6x6xf32>
    %67 = arith.mulf %65, %66 : vector<6x6x6xf32>
    %68 = arith.addf %63, %67 : vector<6x6x6xf32>
    %c13 = arith.constant 13 : index
    %69 = memref.load %arg0[%c13] : memref<27xf32, #tpu.memory_space<smem>>
    %70 = vector.extract_strided_slice %4 {offsets = [1, 1, 1], sizes = [6, 6, 6], strides = [1, 1, 1]} : vector<8x8x8xf32> to vector<6x6x6xf32>
    %71 = vector.broadcast %69 : f32 to vector<6x6x6xf32>
    %72 = arith.mulf %70, %71 : vector<6x6x6xf32>
    %73 = arith.addf %68, %72 : vector<6x6x6xf32>
    %c14 = arith.constant 14 : index
    %74 = memref.load %arg0[%c14] : memref<27xf32, #tpu.memory_space<smem>>
    %75 = vector.extract_strided_slice %4 {offsets = [1, 1, 2], sizes = [6, 6, 6], strides = [1, 1, 1]} : vector<8x8x8xf32> to vector<6x6x6xf32>
    %76 = vector.broadcast %74 : f32 to vector<6x6x6xf32>
    %77 = arith.mulf %75, %76 : vector<6x6x6xf32>
    %78 = arith.addf %73, %77 : vector<6x6x6xf32>
    %c15 = arith.constant 15 : index
    %79 = memref.load %arg0[%c15] : memref<27xf32, #tpu.memory_space<smem>>
    %80 = vector.extract_strided_slice %4 {offsets = [1, 2, 0], sizes = [6, 6, 6], strides = [1, 1, 1]} : vector<8x8x8xf32> to vector<6x6x6xf32>
    %81 = vector.broadcast %79 : f32 to vector<6x6x6xf32>
    %82 = arith.mulf %80, %81 : vector<6x6x6xf32>
    %83 = arith.addf %78, %82 : vector<6x6x6xf32>
    %c16 = arith.constant 16 : index
    %84 = memref.load %arg0[%c16] : memref<27xf32, #tpu.memory_space<smem>>
    %85 = vector.extract_strided_slice %4 {offsets = [1, 2, 1], sizes = [6, 6, 6], strides = [1, 1, 1]} : vector<8x8x8xf32> to vector<6x6x6xf32>
    %86 = vector.broadcast %84 : f32 to vector<6x6x6xf32>
    %87 = arith.mulf %85, %86 : vector<6x6x6xf32>
    %88 = arith.addf %83, %87 : vector<6x6x6xf32>
    %c17 = arith.constant 17 : index
    %89 = memref.load %arg0[%c17] : memref<27xf32, #tpu.memory_space<smem>>
    %90 = vector.extract_strided_slice %4 {offsets = [1, 2, 2], sizes = [6, 6, 6], strides = [1, 1, 1]} : vector<8x8x8xf32> to vector<6x6x6xf32>
    %91 = vector.broadcast %89 : f32 to vector<6x6x6xf32>
    %92 = arith.mulf %90, %91 : vector<6x6x6xf32>
    %93 = arith.addf %88, %92 : vector<6x6x6xf32>
    %c18 = arith.constant 18 : index
    %94 = memref.load %arg0[%c18] : memref<27xf32, #tpu.memory_space<smem>>
    %95 = vector.extract_strided_slice %4 {offsets = [2, 0, 0], sizes = [6, 6, 6], strides = [1, 1, 1]} : vector<8x8x8xf32> to vector<6x6x6xf32>
    %96 = vector.broadcast %94 : f32 to vector<6x6x6xf32>
    %97 = arith.mulf %95, %96 : vector<6x6x6xf32>
    %98 = arith.addf %93, %97 : vector<6x6x6xf32>
    %c19 = arith.constant 19 : index
    %99 = memref.load %arg0[%c19] : memref<27xf32, #tpu.memory_space<smem>>
    %100 = vector.extract_strided_slice %4 {offsets = [2, 0, 1], sizes = [6, 6, 6], strides = [1, 1, 1]} : vector<8x8x8xf32> to vector<6x6x6xf32>
    %101 = vector.broadcast %99 : f32 to vector<6x6x6xf32>
    %102 = arith.mulf %100, %101 : vector<6x6x6xf32>
    %103 = arith.addf %98, %102 : vector<6x6x6xf32>
    %c20 = arith.constant 20 : index
    %104 = memref.load %arg0[%c20] : memref<27xf32, #tpu.memory_space<smem>>
    %105 = vector.extract_strided_slice %4 {offsets = [2, 0, 2], sizes = [6, 6, 6], strides = [1, 1, 1]} : vector<8x8x8xf32> to vector<6x6x6xf32>
    %106 = vector.broadcast %104 : f32 to vector<6x6x6xf32>
    %107 = arith.mulf %105, %106 : vector<6x6x6xf32>
    %108 = arith.addf %103, %107 : vector<6x6x6xf32>
    %c21 = arith.constant 21 : index
    %109 = memref.load %arg0[%c21] : memref<27xf32, #tpu.memory_space<smem>>
    %110 = vector.extract_strided_slice %4 {offsets = [2, 1, 0], sizes = [6, 6, 6], strides = [1, 1, 1]} : vector<8x8x8xf32> to vector<6x6x6xf32>
    %111 = vector.broadcast %109 : f32 to vector<6x6x6xf32>
    %112 = arith.mulf %110, %111 : vector<6x6x6xf32>
    %113 = arith.addf %108, %112 : vector<6x6x6xf32>
    %c22 = arith.constant 22 : index
    %114 = memref.load %arg0[%c22] : memref<27xf32, #tpu.memory_space<smem>>
    %115 = vector.extract_strided_slice %4 {offsets = [2, 1, 1], sizes = [6, 6, 6], strides = [1, 1, 1]} : vector<8x8x8xf32> to vector<6x6x6xf32>
    %116 = vector.broadcast %114 : f32 to vector<6x6x6xf32>
    %117 = arith.mulf %115, %116 : vector<6x6x6xf32>
    %118 = arith.addf %113, %117 : vector<6x6x6xf32>
    %c23 = arith.constant 23 : index
    %119 = memref.load %arg0[%c23] : memref<27xf32, #tpu.memory_space<smem>>
    %120 = vector.extract_strided_slice %4 {offsets = [2, 1, 2], sizes = [6, 6, 6], strides = [1, 1, 1]} : vector<8x8x8xf32> to vector<6x6x6xf32>
    %121 = vector.broadcast %119 : f32 to vector<6x6x6xf32>
    %122 = arith.mulf %120, %121 : vector<6x6x6xf32>
    %123 = arith.addf %118, %122 : vector<6x6x6xf32>
    %c24 = arith.constant 24 : index
    %124 = memref.load %arg0[%c24] : memref<27xf32, #tpu.memory_space<smem>>
    %125 = vector.extract_strided_slice %4 {offsets = [2, 2, 0], sizes = [6, 6, 6], strides = [1, 1, 1]} : vector<8x8x8xf32> to vector<6x6x6xf32>
    %126 = vector.broadcast %124 : f32 to vector<6x6x6xf32>
    %127 = arith.mulf %125, %126 : vector<6x6x6xf32>
    %128 = arith.addf %123, %127 : vector<6x6x6xf32>
    %c25 = arith.constant 25 : index
    %129 = memref.load %arg0[%c25] : memref<27xf32, #tpu.memory_space<smem>>
    %130 = vector.extract_strided_slice %4 {offsets = [2, 2, 1], sizes = [6, 6, 6], strides = [1, 1, 1]} : vector<8x8x8xf32> to vector<6x6x6xf32>
    %131 = vector.broadcast %129 : f32 to vector<6x6x6xf32>
    %132 = arith.mulf %130, %131 : vector<6x6x6xf32>
    %133 = arith.addf %128, %132 : vector<6x6x6xf32>
    %c26 = arith.constant 26 : index
    %134 = memref.load %arg0[%c26] : memref<27xf32, #tpu.memory_space<smem>>
    %135 = vector.extract_strided_slice %4 {offsets = [2, 2, 2], sizes = [6, 6, 6], strides = [1, 1, 1]} : vector<8x8x8xf32> to vector<6x6x6xf32>
    %136 = vector.broadcast %134 : f32 to vector<6x6x6xf32>
    %137 = arith.mulf %135, %136 : vector<6x6x6xf32>
    %138 = arith.addf %133, %137 : vector<6x6x6xf32>
    %139 = vector.shape_cast %138 : vector<6x6x6xf32> to vector<1x6x6x6xf32>
    %cst_12 = arith.constant dense<0.000000e+00> : vector<1xf32>
    %140 = vector.multi_reduction <add>, %139, %cst_12 [1, 2, 3] : vector<1x6x6x6xf32> to vector<1xf32>
    %141 = vector.shape_cast %140 : vector<1xf32> to vector<1x1x1x1xf32>
    %142 = vector.extract %141[0, 0, 0, 0] : f32 from vector<1x1x1x1xf32>
    %143 = arith.mulf %138, %138 : vector<6x6x6xf32>
    %144 = vector.shape_cast %143 : vector<6x6x6xf32> to vector<1x6x6x6xf32>
    %cst_13 = arith.constant dense<0.000000e+00> : vector<1xf32>
    %145 = vector.multi_reduction <add>, %144, %cst_13 [1, 2, 3] : vector<1x6x6x6xf32> to vector<1xf32>
    %146 = vector.shape_cast %145 : vector<1xf32> to vector<1x1x1x1xf32>
    %147 = vector.extract %146[0, 0, 0, 0] : f32 from vector<1x1x1x1xf32>
    %cst_14 = arith.constant 0.00462962966 : f32
    %148 = arith.mulf %142, %cst_14 : f32
    %cst_15 = arith.constant 0.00462962966 : f32
    %149 = arith.mulf %147, %cst_15 : f32
    %150 = arith.mulf %148, %148 : f32
    %151 = arith.subf %149, %150 : f32
    %cst_16 = arith.constant 0.000000e+00 : f32
    %152 = arith.maximumf %151, %cst_16 : f32
    %153 = vector.broadcast %148 : f32 to vector<6x6x6xf32>
    %154 = arith.subf %138, %153 : vector<6x6x6xf32>
    %cst_17 = arith.constant 9.99999974E-6 : f32
    %155 = arith.addf %152, %cst_17 : f32
    %156 = math.rsqrt %155 : f32
    %157 = vector.broadcast %156 : f32 to vector<6x6x6xf32>
    %158 = arith.mulf %154, %157 : vector<6x6x6xf32>
    %c0_18 = arith.constant 0 : index
    %c0_19 = arith.constant 0 : index
    %c0_20 = arith.constant 0 : index
    %159 = vector.load %arg2[%c0_18, %c0_19, %c0_20] : memref<6x6x6xf32, #tpu.memory_space<vmem>>, vector<6x6x6xf32>
    tpu.vector_store %arg2[%c0_18, %c0_19, %c0_20], %158 {strides = array<i32>} : memref<6x6x6xf32, #tpu.memory_space<vmem>>, vector<6x6x6xf32>,
    return
  }
}

</mosaic_0001>

<llo_original>
// kernel: conv3d_bn.1
$region0: #{conv3d_bn.1}
  #allocation0 [shape = 'u32[]', space=smem, size = 0x4, offset = 0x4, fixed_abs, tag = 'smem constant byte address 0x4 - core index']
  #allocation1 [shape = 'u32[144,128]{1,0:T(1,128)}', space=vmem, size = 0x12000, scoped, tag = 'internal scratch']
  #allocation2 [shape = 'f32[8,8,8]{2,1,0:T(8,128)}', space=vmem, size = 0x8000, scoped, tag = 'scratch operand']
  %s0 = inlined_call_operand.vmem [shape: f32[27], index: 0, kind: input, shape index: {}]
  %s1 = inlined_call_operand.vmem [shape: f32[6,6,6], index: 1, kind: input, shape index: {}]
  %s2 = inlined_call_operand.vmem [shape: f32[6,6,6], index: 2, kind: output, shape index: {}]
  %s3 = sld [smem:[#allocation0]]
  $region22: #{conv3d_bn.1} parent=0
    _
  %s5 = ssub.s32 1, %s3
  %s6 = scalar_select 0, %s5, %s3
  $region1: #{conv3d_bn.1} parent=0
    #allocation3 [shape = 'u8[512]{0}', space=smem, size = 0x200, scoped, tag = 'input window, operand 0, single buffered']
    #allocation4 [shape = 's32[1]{0}', space=sflag, size = 0x4, scoped, tag = 'scoped memory for conv3d_bn.1']
    %7 = vsyncpa [#allocation4], 0
    // Predicated region
    $region2: #{conv3d_bn.1} parent=1 // pred_check
      _
    $region3: #{conv3d_bn.1} parent=1 // pred_check_branch
      %9 = sbr.rel (0) target = $region5
    $region4: #{conv3d_bn.1} parent=1 // pred_region
      %s11 = ssub.s32 16, 16
      %12 = vsyncadd [#allocation4], %s11
      %s14 = sshll.u32 %s0, 4
      %s15 = int_to_ptr.vmem [resolvable:$true] %s14
      %17 = dma.vmem_to_smem %s15, 16, [#allocation3], [#allocation4]
    $region5: #{conv3d_bn.1} parent=1 // pred_fallthru
      _
    // Predicated region
    $region6: #{conv3d_bn.1} parent=1 // pred_check
      _
    $region7: #{conv3d_bn.1} parent=1 // pred_check_branch
      %19 = sbr.rel (0) target = $region9
    $region8: #{conv3d_bn.1} parent=1 // pred_region
      _
    $region9: #{conv3d_bn.1} parent=1 // pred_fallthru
      _
    // Predicated region
    $region10: #{conv3d_bn.1} parent=1 // pred_check
      _
    $region11: #{conv3d_bn.1} parent=1 // pred_check_branch
      %21 = sbr.rel (0) target = $region13
    $region12: #{conv3d_bn.1} parent=1 // pred_region
      %22 = dma.done [#allocation4], 16
    $region13: #{conv3d_bn.1} parent=1 // pred_fallthru
      _
    %23 = sfence
    %vm24 = vcmask 64512
    %25 = vst.msk [vmem:[#allocation2] sm:$0xff] %vm24, 0.0
    %26 = vst.msk [vmem:[#allocation2 + $0x8] sm:$0xff] %vm24, 0.0
    %27 = vst.msk [vmem:[#allocation2 + $0x10] sm:$0xff] %vm24, 0.0
    %28 = vst.msk [vmem:[#allocation2 + $0x18] sm:$0xff] %vm24, 0.0
    %29 = vst.msk [vmem:[#allocation2 + $0x20] sm:$0xff] %vm24, 0.0
    %30 = vst.msk [vmem:[#allocation2 + $0x28] sm:$0xff] %vm24, 0.0
    %31 = vst.msk [vmem:[#allocation2 + $0x30] sm:$0xff] %vm24, 0.0
    %32 = vst.msk [vmem:[#allocation2 + $0x38] sm:$0xff] %vm24, 0.0
    %v33 = vld [vmem:[%s1] sm:$0x3f]
    %v34 = vld [vmem:[%s1 + $0x8] sm:$0x3f]
    %v35 = vld [vmem:[%s1 + $0x10] sm:$0x3f]
    %v36 = vld [vmem:[%s1 + $0x18] sm:$0x3f]
    %v37 = vld [vmem:[%s1 + $0x20] sm:$0x3f]
    %v38 = vld [vmem:[%s1 + $0x28] sm:$0x3f]
    %45 = vrot.lane.b32.xlu0 %v33, 1
    %v46 = vpop.permute.xlu0 %45
    %47 = vrot.lane.b32.xlu0 %v34, 1
    %v48 = vpop.permute.xlu0 %47
    %49 = vrot.lane.b32.xlu0 %v35, 1
    %v50 = vpop.permute.xlu0 %49
    %51 = vrot.lane.b32.xlu0 %v36, 1
    %v52 = vpop.permute.xlu0 %51
    %53 = vrot.lane.b32.xlu0 %v37, 1
    %v54 = vpop.permute.xlu0 %53
    %55 = vrot.lane.b32.xlu0 %v38, 1
    %v56 = vpop.permute.xlu0 %55
    %s63 = scalar_lea.vmem [#allocation2], 8
    %vm64 = vcmask 54280
    %65 = vst.msk [vmem:[%s63 + $0x1] sm:$0x3f] %vm64, %v46
    %66 = vst.msk [vmem:[%s63 + $0x9] sm:$0x3f] %vm64, %v48
    %67 = vst.msk [vmem:[%s63 + $0x11] sm:$0x3f] %vm64, %v50
    %68 = vst.msk [vmem:[%s63 + $0x19] sm:$0x3f] %vm64, %v52
    %69 = vst.msk [vmem:[%s63 + $0x21] sm:$0x3f] %vm64, %v54
    %70 = vst.msk [vmem:[%s63 + $0x29] sm:$0x3f] %vm64, %v56
    %v71 = vld [vmem:[#allocation2] sm:$0xff]
    %v72 = vld [vmem:[#allocation2 + $0x8] sm:$0xff]
    %v73 = vld [vmem:[#allocation2 + $0x10] sm:$0xff]
    %v74 = vld [vmem:[#allocation2 + $0x18] sm:$0xff]
    %v75 = vld [vmem:[#allocation2 + $0x20] sm:$0xff]
    %v76 = vld [vmem:[#allocation2 + $0x28] sm:$0xff]
    %v77 = vld [vmem:[#allocation2 + $0x30] sm:$0xff]
    %v78 = vld [vmem:[#allocation2 + $0x38] sm:$0xff]
    %s79 = sld [smem:[#allocation3]]
    %v80 = vstv %s79
    %v81 = vmul.f32 %v71, %v80
    %v82 = vmul.f32 %v72, %v80
    %v83 = vmul.f32 %v73, %v80
    %v84 = vmul.f32 %v74, %v80
    %v85 = vmul.f32 %v75, %v80
    %v86 = vmul.f32 %v76, %v80
    %s87 = sld [smem:[#allocation3 + $0x1]]
    %v88 = vstv %s87
    %v89 = vmul.f32 %v71, %v88
    %v90 = vmul.f32 %v72, %v88
    %v91 = vmul.f32 %v73, %v88
    %v92 = vmul.f32 %v74, %v88
    %v93 = vmul.f32 %v75, %v88
    %v94 = vmul.f32 %v76, %v88
    %101 = vrot.lane.b32.xlu0 %v89, 127
    %v102 = vpop.permute.xlu0 %101
    %103 = vrot.lane.b32.xlu0 %v90, 127
    %v104 = vpop.permute.xlu0 %103
    %105 = vrot.lane.b32.xlu0 %v91, 127
    %v106 = vpop.permute.xlu0 %105
    %107 = vrot.lane.b32.xlu0 %v92, 127
    %v108 = vpop.permute.xlu0 %107
    %109 = vrot.lane.b32.xlu0 %v93, 127
    %v110 = vpop.permute.xlu0 %109
    %111 = vrot.lane.b32.xlu0 %v94, 127
    %v112 = vpop.permute.xlu0 %111
    %v119 = vadd.f32 %v81, %v102
    %v120 = vadd.f32 %v82, %v104
    %v121 = vadd.f32 %v83, %v106
    %v122 = vadd.f32 %v84, %v108
    %v123 = vadd.f32 %v85, %v110
    %v124 = vadd.f32 %v86, %v112
    %s125 = sld [smem:[#allocation3 + $0x2]]
    %v126 = vstv %s125
    %v127 = vmul.f32 %v71, %v126
    %v128 = vmul.f32 %v72, %v126
    %v129 = vmul.f32 %v73, %v126
    %v130 = vmul.f32 %v74, %v126
    %v131 = vmul.f32 %v75, %v126
    %v132 = vmul.f32 %v76, %v126
    %139 = vrot.lane.b32.xlu0 %v127, 126
    %v140 = vpop.permute.xlu0 %139
    %141 = vrot.lane.b32.xlu0 %v128, 126
    %v142 = vpop.permute.xlu0 %141
    %143 = vrot.lane.b32.xlu0 %v129, 126
    %v144 = vpop.permute.xlu0 %143
    %145 = vrot.lane.b32.xlu0 %v130, 126
    %v146 = vpop.permute.xlu0 %145
    %147 = vrot.lane.b32.xlu0 %v131, 126
    %v148 = vpop.permute.xlu0 %147
    %149 = vrot.lane.b32.xlu0 %v132, 126
    %v150 = vpop.permute.xlu0 %149
    %v157 = vadd.f32 %v119, %v140
    %v158 = vadd.f32 %v120, %v142
    %v159 = vadd.f32 %v121, %v144
    %v160 = vadd.f32 %v122, %v146
    %v161 = vadd.f32 %v123, %v148
    %v162 = vadd.f32 %v124, %v150
    %s163 = sld [smem:[#allocation3 + $0x3]]
    %v164 = vstv %s163
    %v165 = vmul.f32 %v71, %v164
    %v166 = vmul.f32 %v72, %v164
    %v167 = vmul.f32 %v73, %v164
    %v168 = vmul.f32 %v74, %v164
    %v169 = vmul.f32 %v75, %v164
    %v170 = vmul.f32 %v76, %v164
    %v177 = vrot.slane %v165, 1
    %v178 = vrot.slane %v166, 1
    %v179 = vrot.slane %v167, 1
    %v180 = vrot.slane %v168, 1
    %v181 = vrot.slane %v169, 1
    %v182 = vrot.slane %v170, 1
    %v189 = vadd.f32 %v157, %v177
    %v190 = vadd.f32 %v158, %v178
    %v191 = vadd.f32 %v159, %v179
    %v192 = vadd.f32 %v160, %v180
    %v193 = vadd.f32 %v161, %v181
    %v194 = vadd.f32 %v162, %v182
    %s195 = sld [smem:[#allocation3 + $0x4]]
    %v196 = vstv %s195
    %v197 = vmul.f32 %v71, %v196
    %v198 = vmul.f32 %v72, %v196
    %v199 = vmul.f32 %v73, %v196
    %v200 = vmul.f32 %v74, %v196
    %v201 = vmul.f32 %v75, %v196
    %v202 = vmul.f32 %v76, %v196
    %v209 = vrot.slane %v197, 1
    %v210 = vrot.slane %v198, 1
    %v211 = vrot.slane %v199, 1
    %v212 = vrot.slane %v200, 1
    %v213 = vrot.slane %v201, 1
    %v214 = vrot.slane %v202, 1
    %215 = vrot.lane.b32.xlu0 %v209, 127
    %v216 = vpop.permute.xlu0 %215
    %217 = vrot.lane.b32.xlu0 %v210, 127
    %v218 = vpop.permute.xlu0 %217
    %219 = vrot.lane.b32.xlu0 %v211, 127
    %v220 = vpop.permute.xlu0 %219
    %221 = vrot.lane.b32.xlu0 %v212, 127
    %v222 = vpop.permute.xlu0 %221
    %223 = vrot.lane.b32.xlu0 %v213, 127
    %v224 = vpop.permute.xlu0 %223
    %225 = vrot.lane.b32.xlu0 %v214, 127
    %v226 = vpop.permute.xlu0 %225
    %v233 = vadd.f32 %v189, %v216
    %v234 = vadd.f32 %v190, %v218
    %v235 = vadd.f32 %v191, %v220
    %v236 = vadd.f32 %v192, %v222
    %v237 = vadd.f32 %v193, %v224
    %v238 = vadd.f32 %v194, %v226
    %s239 = sld [smem:[#allocation3 + $0x5]]
    %v240 = vstv %s239
    %v241 = vmul.f32 %v71, %v240
    %v242 = vmul.f32 %v72, %v240
    %v243 = vmul.f32 %v73, %v240
    %v244 = vmul.f32 %v74, %v240
    %v245 = vmul.f32 %v75, %v240
    %v246 = vmul.f32 %v76, %v240
    %v253 = vrot.slane %v241, 1
    %v254 = vrot.slane %v242, 1
    %v255 = vrot.slane %v243, 1
    %v256 = vrot.slane %v244, 1
    %v257 = vrot.slane %v245, 1
    %v258 = vrot.slane %v246, 1
    %259 = vrot.lane.b32.xlu0 %v253, 126
    %v260 = vpop.permute.xlu0 %259
    %261 = vrot.lane.b32.xlu0 %v254, 126
    %v262 = vpop.permute.xlu0 %261
    %263 = vrot.lane.b32.xlu0 %v255, 126
    %v264 = vpop.permute.xlu0 %263
    %265 = vrot.lane.b32.xlu0 %v256, 126
    %v266 = vpop.permute.xlu0 %265
    %267 = vrot.lane.b32.xlu0 %v257, 126
    %v268 = vpop.permute.xlu0 %267
    %269 = vrot.lane.b32.xlu0 %v258, 126
    %v270 = vpop.permute.xlu0 %269
    %v277 = vadd.f32 %v233, %v260
    %v278 = vadd.f32 %v234, %v262
    %v279 = vadd.f32 %v235, %v264
    %v280 = vadd.f32 %v236, %v266
    %v281 = vadd.f32 %v237, %v268
    %v282 = vadd.f32 %v238, %v270
    %s283 = sld [smem:[#allocation3 + $0x6]]
    %v284 = vstv %s283
    %v285 = vmul.f32 %v71, %v284
    %v286 = vmul.f32 %v72, %v284
    %v287 = vmul.f32 %v73, %v284
    %v288 = vmul.f32 %v74, %v284
    %v289 = vmul.f32 %v75, %v284
    %v290 = vmul.f32 %v76, %v284
    %v297 = vrot.slane %v285, 2
    %v298 = vrot.slane %v286, 2
    %v299 = vrot.slane %v287, 2
    %v300 = vrot.slane %v288, 2
    %v301 = vrot.slane %v289, 2
    %v302 = vrot.slane %v290, 2
    %v309 = vadd.f32 %v277, %v297
    %v310 = vadd.f32 %v278, %v298
    %v311 = vadd.f32 %v279, %v299
    %v312 = vadd.f32 %v280, %v300
    %v313 = vadd.f32 %v281, %v301
    %v314 = vadd.f32 %v282, %v302
    %s315 = sld [smem:[#allocation3 + $0x7]]
    %v316 = vstv %s315
    %v317 = vmul.f32 %v71, %v316
    %v318 = vmul.f32 %v72, %v316
    %v319 = vmul.f32 %v73, %v316
    %v320 = vmul.f32 %v74, %v316
    %v321 = vmul.f32 %v75, %v316
    %v322 = vmul.f32 %v76, %v316
    %v329 = vrot.slane %v317, 2
    %v330 = vrot.slane %v318, 2
    %v331 = vrot.slane %v319, 2
    %v332 = vrot.slane %v320, 2
    %v333 = vrot.slane %v321, 2
    %v334 = vrot.slane %v322, 2
    %335 = vrot.lane.b32.xlu0 %v329, 127
    %v336 = vpop.permute.xlu0 %335
    %337 = vrot.lane.b32.xlu0 %v330, 127
    %v338 = vpop.permute.xlu0 %337
    %339 = vrot.lane.b32.xlu0 %v331, 127
    %v340 = vpop.permute.xlu0 %339
    %341 = vrot.lane.b32.xlu0 %v332, 127
    %v342 = vpop.permute.xlu0 %341
    %343 = vrot.lane.b32.xlu0 %v333, 127
    %v344 = vpop.permute.xlu0 %343
    %345 = vrot.lane.b32.xlu0 %v334, 127
    %v346 = vpop.permute.xlu0 %345
    %v353 = vadd.f32 %v309, %v336
    %v354 = vadd.f32 %v310, %v338
    %v355 = vadd.f32 %v311, %v340
    %v356 = vadd.f32 %v312, %v342
    %v357 = vadd.f32 %v313, %v344
    %v358 = vadd.f32 %v314, %v346
    %s359 = sld [smem:[#allocation3 + $0x8]]
    %v360 = vstv %s359
    %v361 = vmul.f32 %v71, %v360
    %v362 = vmul.f32 %v72, %v360
    %v363 = vmul.f32 %v73, %v360
    %v364 = vmul.f32 %v74, %v360
    %v365 = vmul.f32 %v75, %v360
    %v366 = vmul.f32 %v76, %v360
    %v373 = vrot.slane %v361, 2
    %v374 = vrot.slane %v362, 2
    %v375 = vrot.slane %v363, 2
    %v376 = vrot.slane %v364, 2
    %v377 = vrot.slane %v365, 2
    %v378 = vrot.slane %v366, 2
    %379 = vrot.lane.b32.xlu0 %v373, 126
    %v380 = vpop.permute.xlu0 %379
    %381 = vrot.lane.b32.xlu0 %v374, 126
    %v382 = vpop.permute.xlu0 %381
    %383 = vrot.lane.b32.xlu0 %v375, 126
    %v384 = vpop.permute.xlu0 %383
    %385 = vrot.lane.b32.xlu0 %v376, 126
    %v386 = vpop.permute.xlu0 %385
    %387 = vrot.lane.b32.xlu0 %v377, 126
    %v388 = vpop.permute.xlu0 %387
    %389 = vrot.lane.b32.xlu0 %v378, 126
    %v390 = vpop.permute.xlu0 %389
    %v397 = vadd.f32 %v353, %v380
    %v398 = vadd.f32 %v354, %v382
    %v399 = vadd.f32 %v355, %v384
    %v400 = vadd.f32 %v356, %v386
    %v401 = vadd.f32 %v357, %v388
    %v402 = vadd.f32 %v358, %v390
    %s403 = sld [smem:[#allocation3 + $0x9]]
    %v404 = vstv %s403
    %v405 = vmul.f32 %v72, %v404
    %v406 = vmul.f32 %v73, %v404
    %v407 = vmul.f32 %v74, %v404
    %v408 = vmul.f32 %v75, %v404
    %v409 = vmul.f32 %v76, %v404
    %v410 = vmul.f32 %v77, %v404
    %v411 = vadd.f32 %v397, %v405
    %v412 = vadd.f32 %v398, %v406
    %v413 = vadd.f32 %v399, %v407
    %v414 = vadd.f32 %v400, %v408
    %v415 = vadd.f32 %v401, %v409
    %v416 = vadd.f32 %v402, %v410
    %s417 = sld [smem:[#allocation3 + $0xa]]
    %v418 = vstv %s417
    %v419 = vmul.f32 %v72, %v418
    %v420 = vmul.f32 %v73, %v418
    %v421 = vmul.f32 %v74, %v418
    %v422 = vmul.f32 %v75, %v418
    %v423 = vmul.f32 %v76, %v418
    %v424 = vmul.f32 %v77, %v418
    %431 = vrot.lane.b32.xlu0 %v419, 127
    %v432 = vpop.permute.xlu0 %431
    %433 = vrot.lane.b32.xlu0 %v420, 127
    %v434 = vpop.permute.xlu0 %433
    %435 = vrot.lane.b32.xlu0 %v421, 127
    %v436 = vpop.permute.xlu0 %435
    %437 = vrot.lane.b32.xlu0 %v422, 127
    %v438 = vpop.permute.xlu0 %437
    %439 = vrot.lane.b32.xlu0 %v423, 127
    %v440 = vpop.permute.xlu0 %439
    %441 = vrot.lane.b32.xlu0 %v424, 127
    %v442 = vpop.permute.xlu0 %441
    %v449 = vadd.f32 %v411, %v432
    %v450 = vadd.f32 %v412, %v434
    %v451 = vadd.f32 %v413, %v436
    %v452 = vadd.f32 %v414, %v438
    %v453 = vadd.f32 %v415, %v440
    %v454 = vadd.f32 %v416, %v442
    %s455 = sld [smem:[#allocation3 + $0xb]]
    %v456 = vstv %s455
    %v457 = vmul.f32 %v72, %v456
    %v458 = vmul.f32 %v73, %v456
    %v459 = vmul.f32 %v74, %v456
    %v460 = vmul.f32 %v75, %v456
    %v461 = vmul.f32 %v76, %v456
    %v462 = vmul.f32 %v77, %v456
    %469 = vrot.lane.b32.xlu0 %v457, 126
    %v470 = vpop.permute.xlu0 %469
    %471 = vrot.lane.b32.xlu0 %v458, 126
    %v472 = vpop.permute.xlu0 %471
    %473 = vrot.lane.b32.xlu0 %v459, 126
    %v474 = vpop.permute.xlu0 %473
    %475 = vrot.lane.b32.xlu0 %v460, 126
    %v476 = vpop.permute.xlu0 %475
    %477 = vrot.lane.b32.xlu0 %v461, 126
    %v478 = vpop.permute.xlu0 %477
    %479 = vrot.lane.b32.xlu0 %v462, 126
    %v480 = vpop.permute.xlu0 %479
    %v487 = vadd.f32 %v449, %v470
    %v488 = vadd.f32 %v450, %v472
    %v489 = vadd.f32 %v451, %v474
    %v490 = vadd.f32 %v452, %v476
    %v491 = vadd.f32 %v453, %v478
    %v492 = vadd.f32 %v454, %v480
    %s493 = sld [smem:[#allocation3 + $0xc]]
    %v494 = vstv %s493
    %v495 = vmul.f32 %v72, %v494
    %v496 = vmul.f32 %v73, %v494
    %v497 = vmul.f32 %v74, %v494
    %v498 = vmul.f32 %v75, %v494
    %v499 = vmul.f32 %v76, %v494
    %v500 = vmul.f32 %v77, %v494
    %v507 = vrot.slane %v495, 1
    %v508 = vrot.slane %v496, 1
    %v509 = vrot.slane %v497, 1
    %v510 = vrot.slane %v498, 1
    %v511 = vrot.slane %v499, 1
    %v512 = vrot.slane %v500, 1
    %v519 = vadd.f32 %v487, %v507
    %v520 = vadd.f32 %v488, %v508
    %v521 = vadd.f32 %v489, %v509
    %v522 = vadd.f32 %v490, %v510
    %v523 = vadd.f32 %v491, %v511
    %v524 = vadd.f32 %v492, %v512
    %s525 = sld [smem:[#allocation3 + $0xd]]
    %v526 = vstv %s525
    %v527 = vmul.f32 %v72, %v526
    %v528 = vmul.f32 %v73, %v526
    %v529 = vmul.f32 %v74, %v526
    %v530 = vmul.f32 %v75, %v526
    %v531 = vmul.f32 %v76, %v526
    %v532 = vmul.f32 %v77, %v526
    %v539 = vrot.slane %v527, 1
    %v540 = vrot.slane %v528, 1
    %v541 = vrot.slane %v529, 1
    %v542 = vrot.slane %v530, 1
    %v543 = vrot.slane %v531, 1
    %v544 = vrot.slane %v532, 1
    %545 = vrot.lane.b32.xlu0 %v539, 127
    %v546 = vpop.permute.xlu0 %545
    %547 = vrot.lane.b32.xlu0 %v540, 127
    %v548 = vpop.permute.xlu0 %547
    %549 = vrot.lane.b32.xlu0 %v541, 127
    %v550 = vpop.permute.xlu0 %549
    %551 = vrot.lane.b32.xlu0 %v542, 127
    %v552 = vpop.permute.xlu0 %551
    %553 = vrot.lane.b32.xlu0 %v543, 127
    %v554 = vpop.permute.xlu0 %553
    %555 = vrot.lane.b32.xlu0 %v544, 127
    %v556 = vpop.permute.xlu0 %555
    %v563 = vadd.f32 %v519, %v546
    %v564 = vadd.f32 %v520, %v548
    %v565 = vadd.f32 %v521, %v550
    %v566 = vadd.f32 %v522, %v552
    %v567 = vadd.f32 %v523, %v554
    %v568 = vadd.f32 %v524, %v556
    %s569 = sld [smem:[#allocation3 + $0xe]]
    %v570 = vstv %s569
    %v571 = vmul.f32 %v72, %v570
    %v572 = vmul.f32 %v73, %v570
    %v573 = vmul.f32 %v74, %v570
    %v574 = vmul.f32 %v75, %v570
    %v575 = vmul.f32 %v76, %v570
    %v576 = vmul.f32 %v77, %v570
    %v583 = vrot.slane %v571, 1
    %v584 = vrot.slane %v572, 1
    %v585 = vrot.slane %v573, 1
    %v586 = vrot.slane %v574, 1
    %v587 = vrot.slane %v575, 1
    %v588 = vrot.slane %v576, 1
    %589 = vrot.lane.b32.xlu0 %v583, 126
    %v590 = vpop.permute.xlu0 %589
    %591 = vrot.lane.b32.xlu0 %v584, 126
    %v592 = vpop.permute.xlu0 %591
    %593 = vrot.lane.b32.xlu0 %v585, 126
    %v594 = vpop.permute.xlu0 %593
    %595 = vrot.lane.b32.xlu0 %v586, 126
    %v596 = vpop.permute.xlu0 %595
    %597 = vrot.lane.b32.xlu0 %v587, 126
    %v598 = vpop.permute.xlu0 %597
    %599 = vrot.lane.b32.xlu0 %v588, 126
    %v600 = vpop.permute.xlu0 %599
    %v607 = vadd.f32 %v563, %v590
    %v608 = vadd.f32 %v564, %v592
    %v609 = vadd.f32 %v565, %v594
    %v610 = vadd.f32 %v566, %v596
    %v611 = vadd.f32 %v567, %v598
    %v612 = vadd.f32 %v568, %v600
    %s613 = sld [smem:[#allocation3 + $0xf]]
    %v614 = vstv %s613
    %v615 = vmul.f32 %v72, %v614
    %v616 = vmul.f32 %v73, %v614
    %v617 = vmul.f32 %v74, %v614
    %v618 = vmul.f32 %v75, %v614
    %v619 = vmul.f32 %v76, %v614
    %v620 = vmul.f32 %v77, %v614
    %v627 = vrot.slane %v615, 2
    %v628 = vrot.slane %v616, 2
    %v629 = vrot.slane %v617, 2
    %v630 = vrot.slane %v618, 2
    %v631 = vrot.slane %v619, 2
    %v632 = vrot.slane %v620, 2
    %v639 = vadd.f32 %v607, %v627
    %v640 = vadd.f32 %v608, %v628
    %v641 = vadd.f32 %v609, %v629
    %v642 = vadd.f32 %v610, %v630
    %v643 = vadd.f32 %v611, %v631
    %v644 = vadd.f32 %v612, %v632
    %s645 = sld [smem:[#allocation3 + $0x10]]
    %v646 = vstv %s645
    %v647 = vmul.f32 %v72, %v646
    %v648 = vmul.f32 %v73, %v646
    %v649 = vmul.f32 %v74, %v646
    %v650 = vmul.f32 %v75, %v646
    %v651 = vmul.f32 %v76, %v646
    %v652 = vmul.f32 %v77, %v646
    %v659 = vrot.slane %v647, 2
    %v660 = vrot.slane %v648, 2
    %v661 = vrot.slane %v649, 2
    %v662 = vrot.slane %v650, 2
    %v663 = vrot.slane %v651, 2
    %v664 = vrot.slane %v652, 2
    %665 = vrot.lane.b32.xlu0 %v659, 127
    %v666 = vpop.permute.xlu0 %665
    %667 = vrot.lane.b32.xlu0 %v660, 127
    %v668 = vpop.permute.xlu0 %667
    %669 = vrot.lane.b32.xlu0 %v661, 127
    %v670 = vpop.permute.xlu0 %669
    %671 = vrot.lane.b32.xlu0 %v662, 127
    %v672 = vpop.permute.xlu0 %671
    %673 = vrot.lane.b32.xlu0 %v663, 127
    %v674 = vpop.permute.xlu0 %673
    %675 = vrot.lane.b32.xlu0 %v664, 127
    %v676 = vpop.permute.xlu0 %675
    %v683 = vadd.f32 %v639, %v666
    %v684 = vadd.f32 %v640, %v668
    %v685 = vadd.f32 %v641, %v670
    %v686 = vadd.f32 %v642, %v672
    %v687 = vadd.f32 %v643, %v674
    %v688 = vadd.f32 %v644, %v676
    %s689 = sld [smem:[#allocation3 + $0x11]]
    %v690 = vstv %s689
    %v691 = vmul.f32 %v72, %v690
    %v692 = vmul.f32 %v73, %v690
    %v693 = vmul.f32 %v74, %v690
    %v694 = vmul.f32 %v75, %v690
    %v695 = vmul.f32 %v76, %v690
    %v696 = vmul.f32 %v77, %v690
    %v703 = vrot.slane %v691, 2
    %v704 = vrot.slane %v692, 2
    %v705 = vrot.slane %v693, 2
    %v706 = vrot.slane %v694, 2
    %v707 = vrot.slane %v695, 2
    %v708 = vrot.slane %v696, 2
    %709 = vrot.lane.b32.xlu0 %v703, 126
    %v710 = vpop.permute.xlu0 %709
    %711 = vrot.lane.b32.xlu0 %v704, 126
    %v712 = vpop.permute.xlu0 %711
    %713 = vrot.lane.b32.xlu0 %v705, 126
    %v714 = vpop.permute.xlu0 %713
    %715 = vrot.lane.b32.xlu0 %v706, 126
    %v716 = vpop.permute.xlu0 %715
    %717 = vrot.lane.b32.xlu0 %v707, 126
    %v718 = vpop.permute.xlu0 %717
    %719 = vrot.lane.b32.xlu0 %v708, 126
    %v720 = vpop.permute.xlu0 %719
    %v727 = vadd.f32 %v683, %v710
    %v728 = vadd.f32 %v684, %v712
    %v729 = vadd.f32 %v685, %v714
    %v730 = vadd.f32 %v686, %v716
    %v731 = vadd.f32 %v687, %v718
    %v732 = vadd.f32 %v688, %v720
    %s733 = sld [smem:[#allocation3 + $0x12]]
    %v734 = vstv %s733
    %v735 = vmul.f32 %v73, %v734
    %v736 = vmul.f32 %v74, %v734
    %v737 = vmul.f32 %v75, %v734
    %v738 = vmul.f32 %v76, %v734
    %v739 = vmul.f32 %v77, %v734
    %v740 = vmul.f32 %v78, %v734
    %v741 = vadd.f32 %v727, %v735
    %v742 = vadd.f32 %v728, %v736
    %v743 = vadd.f32 %v729, %v737
    %v744 = vadd.f32 %v730, %v738
    %v745 = vadd.f32 %v731, %v739
    %v746 = vadd.f32 %v732, %v740
    %s747 = sld [smem:[#allocation3 + $0x13]]
    %v748 = vstv %s747
    %v749 = vmul.f32 %v73, %v748
    %v750 = vmul.f32 %v74, %v748
    %v751 = vmul.f32 %v75, %v748
    %v752 = vmul.f32 %v76, %v748
    %v753 = vmul.f32 %v77, %v748
    %v754 = vmul.f32 %v78, %v748
    %761 = vrot.lane.b32.xlu0 %v749, 127
    %v762 = vpop.permute.xlu0 %761
    %763 = vrot.lane.b32.xlu0 %v750, 127
    %v764 = vpop.permute.xlu0 %763
    %765 = vrot.lane.b32.xlu0 %v751, 127
    %v766 = vpop.permute.xlu0 %765
    %767 = vrot.lane.b32.xlu0 %v752, 127
    %v768 = vpop.permute.xlu0 %767
    %769 = vrot.lane.b32.xlu0 %v753, 127
    %v770 = vpop.permute.xlu0 %769
    %771 = vrot.lane.b32.xlu0 %v754, 127
    %v772 = vpop.permute.xlu0 %771
    %v779 = vadd.f32 %v741, %v762
    %v780 = vadd.f32 %v742, %v764
    %v781 = vadd.f32 %v743, %v766
    %v782 = vadd.f32 %v744, %v768
    %v783 = vadd.f32 %v745, %v770
    %v784 = vadd.f32 %v746, %v772
    %s785 = sld [smem:[#allocation3 + $0x14]]
    %v786 = vstv %s785
    %v787 = vmul.f32 %v73, %v786
    %v788 = vmul.f32 %v74, %v786
    %v789 = vmul.f32 %v75, %v786
    %v790 = vmul.f32 %v76, %v786
    %v791 = vmul.f32 %v77, %v786
    %v792 = vmul.f32 %v78, %v786
    %799 = vrot.lane.b32.xlu0 %v787, 126
    %v800 = vpop.permute.xlu0 %799
    %801 = vrot.lane.b32.xlu0 %v788, 126
    %v802 = vpop.permute.xlu0 %801
    %803 = vrot.lane.b32.xlu0 %v789, 126
    %v804 = vpop.permute.xlu0 %803
    %805 = vrot.lane.b32.xlu0 %v790, 126
    %v806 = vpop.permute.xlu0 %805
    %807 = vrot.lane.b32.xlu0 %v791, 126
    %v808 = vpop.permute.xlu0 %807
    %809 = vrot.lane.b32.xlu0 %v792, 126
    %v810 = vpop.permute.xlu0 %809
    %v817 = vadd.f32 %v779, %v800
    %v818 = vadd.f32 %v780, %v802
    %v819 = vadd.f32 %v781, %v804
    %v820 = vadd.f32 %v782, %v806
    %v821 = vadd.f32 %v783, %v808
    %v822 = vadd.f32 %v784, %v810
    %s823 = sld [smem:[#allocation3 + $0x15]]
    %v824 = vstv %s823
    %v825 = vmul.f32 %v73, %v824
    %v826 = vmul.f32 %v74, %v824
    %v827 = vmul.f32 %v75, %v824
    %v828 = vmul.f32 %v76, %v824
    %v829 = vmul.f32 %v77, %v824
    %v830 = vmul.f32 %v78, %v824
    %v837 = vrot.slane %v825, 1
    %v838 = vrot.slane %v826, 1
    %v839 = vrot.slane %v827, 1
    %v840 = vrot.slane %v828, 1
    %v841 = vrot.slane %v829, 1
    %v842 = vrot.slane %v830, 1
    %v849 = vadd.f32 %v817, %v837
    %v850 = vadd.f32 %v818, %v838
    %v851 = vadd.f32 %v819, %v839
    %v852 = vadd.f32 %v820, %v840
    %v853 = vadd.f32 %v821, %v841
    %v854 = vadd.f32 %v822, %v842
    %s855 = sld [smem:[#allocation3 + $0x16]]
    %v856 = vstv %s855
    %v857 = vmul.f32 %v73, %v856
    %v858 = vmul.f32 %v74, %v856
    %v859 = vmul.f32 %v75, %v856
    %v860 = vmul.f32 %v76, %v856
    %v861 = vmul.f32 %v77, %v856
    %v862 = vmul.f32 %v78, %v856
    %v869 = vrot.slane %v857, 1
    %v870 = vrot.slane %v858, 1
    %v871 = vrot.slane %v859, 1
    %v872 = vrot.slane %v860, 1
    %v873 = vrot.slane %v861, 1
    %v874 = vrot.slane %v862, 1
    %875 = vrot.lane.b32.xlu0 %v869, 127
    %v876 = vpop.permute.xlu0 %875
    %877 = vrot.lane.b32.xlu0 %v870, 127
    %v878 = vpop.permute.xlu0 %877
    %879 = vrot.lane.b32.xlu0 %v871, 127
    %v880 = vpop.permute.xlu0 %879
    %881 = vrot.lane.b32.xlu0 %v872, 127
    %v882 = vpop.permute.xlu0 %881
    %883 = vrot.lane.b32.xlu0 %v873, 127
    %v884 = vpop.permute.xlu0 %883
    %885 = vrot.lane.b32.xlu0 %v874, 127
    %v886 = vpop.permute.xlu0 %885
    %v893 = vadd.f32 %v849, %v876
    %v894 = vadd.f32 %v850, %v878
    %v895 = vadd.f32 %v851, %v880
    %v896 = vadd.f32 %v852, %v882
    %v897 = vadd.f32 %v853, %v884
    %v898 = vadd.f32 %v854, %v886
    %s899 = sld [smem:[#allocation3 + $0x17]]
    %v900 = vstv %s899
    %v901 = vmul.f32 %v73, %v900
    %v902 = vmul.f32 %v74, %v900
    %v903 = vmul.f32 %v75, %v900
    %v904 = vmul.f32 %v76, %v900
    %v905 = vmul.f32 %v77, %v900
    %v906 = vmul.f32 %v78, %v900
    %v913 = vrot.slane %v901, 1
    %v914 = vrot.slane %v902, 1
    %v915 = vrot.slane %v903, 1
    %v916 = vrot.slane %v904, 1
    %v917 = vrot.slane %v905, 1
    %v918 = vrot.slane %v906, 1
    %919 = vrot.lane.b32.xlu0 %v913, 126
    %v920 = vpop.permute.xlu0 %919
    %921 = vrot.lane.b32.xlu0 %v914, 126
    %v922 = vpop.permute.xlu0 %921
    %923 = vrot.lane.b32.xlu0 %v915, 126
    %v924 = vpop.permute.xlu0 %923
    %925 = vrot.lane.b32.xlu0 %v916, 126
    %v926 = vpop.permute.xlu0 %925
    %927 = vrot.lane.b32.xlu0 %v917, 126
    %v928 = vpop.permute.xlu0 %927
    %929 = vrot.lane.b32.xlu0 %v918, 126
    %v930 = vpop.permute.xlu0 %929
    %v937 = vadd.f32 %v893, %v920
    %v938 = vadd.f32 %v894, %v922
    %v939 = vadd.f32 %v895, %v924
    %v940 = vadd.f32 %v896, %v926
    %v941 = vadd.f32 %v897, %v928
    %v942 = vadd.f32 %v898, %v930
    %s943 = sld [smem:[#allocation3 + $0x18]]
    %v944 = vstv %s943
    %v945 = vmul.f32 %v73, %v944
    %v946 = vmul.f32 %v74, %v944
    %v947 = vmul.f32 %v75, %v944
    %v948 = vmul.f32 %v76, %v944
    %v949 = vmul.f32 %v77, %v944
    %v950 = vmul.f32 %v78, %v944
    %v957 = vrot.slane %v945, 2
    %v958 = vrot.slane %v946, 2
    %v959 = vrot.slane %v947, 2
    %v960 = vrot.slane %v948, 2
    %v961 = vrot.slane %v949, 2
    %v962 = vrot.slane %v950, 2
    %v969 = vadd.f32 %v937, %v957
    %v970 = vadd.f32 %v938, %v958
    %v971 = vadd.f32 %v939, %v959
    %v972 = vadd.f32 %v940, %v960
    %v973 = vadd.f32 %v941, %v961
    %v974 = vadd.f32 %v942, %v962
    %s975 = sld [smem:[#allocation3 + $0x19]]
    %v976 = vstv %s975
    %v977 = vmul.f32 %v73, %v976
    %v978 = vmul.f32 %v74, %v976
    %v979 = vmul.f32 %v75, %v976
    %v980 = vmul.f32 %v76, %v976
    %v981 = vmul.f32 %v77, %v976
    %v982 = vmul.f32 %v78, %v976
    %v989 = vrot.slane %v977, 2
    %v990 = vrot.slane %v978, 2
    %v991 = vrot.slane %v979, 2
    %v992 = vrot.slane %v980, 2
    %v993 = vrot.slane %v981, 2
    %v994 = vrot.slane %v982, 2
    %995 = vrot.lane.b32.xlu0 %v989, 127
    %v996 = vpop.permute.xlu0 %995
    %997 = vrot.lane.b32.xlu0 %v990, 127
    %v998 = vpop.permute.xlu0 %997
    %999 = vrot.lane.b32.xlu0 %v991, 127
    %v1000 = vpop.permute.xlu0 %999
    %1001 = vrot.lane.b32.xlu0 %v992, 127
    %v1002 = vpop.permute.xlu0 %1001
    %1003 = vrot.lane.b32.xlu0 %v993, 127
    %v1004 = vpop.permute.xlu0 %1003
    %1005 = vrot.lane.b32.xlu0 %v994, 127
    %v1006 = vpop.permute.xlu0 %1005
    %v1013 = vadd.f32 %v969, %v996
    %v1014 = vadd.f32 %v970, %v998
    %v1015 = vadd.f32 %v971, %v1000
    %v1016 = vadd.f32 %v972, %v1002
    %v1017 = vadd.f32 %v973, %v1004
    %v1018 = vadd.f32 %v974, %v1006
    %s1019 = sld [smem:[#allocation3 + $0x1a]]
    %v1020 = vstv %s1019
    %v1021 = vmul.f32 %v73, %v1020
    %v1022 = vmul.f32 %v74, %v1020
    %v1023 = vmul.f32 %v75, %v1020
    %v1024 = vmul.f32 %v76, %v1020
    %v1025 = vmul.f32 %v77, %v1020
    %v1026 = vmul.f32 %v78, %v1020
    %v1033 = vrot.slane %v1021, 2
    %v1034 = vrot.slane %v1022, 2
    %v1035 = vrot.slane %v1023, 2
    %v1036 = vrot.slane %v1024, 2
    %v1037 = vrot.slane %v1025, 2
    %v1038 = vrot.slane %v1026, 2
    %1039 = vrot.lane.b32.xlu0 %v1033, 126
    %v1040 = vpop.permute.xlu0 %1039
    %1041 = vrot.lane.b32.xlu0 %v1034, 126
    %v1042 = vpop.permute.xlu0 %1041
    %1043 = vrot.lane.b32.xlu0 %v1035, 126
    %v1044 = vpop.permute.xlu0 %1043
    %1045 = vrot.lane.b32.xlu0 %v1036, 126
    %v1046 = vpop.permute.xlu0 %1045
    %1047 = vrot.lane.b32.xlu0 %v1037, 126
    %v1048 = vpop.permute.xlu0 %1047
    %1049 = vrot.lane.b32.xlu0 %v1038, 126
    %v1050 = vpop.permute.xlu0 %1049
    %v1057 = vadd.f32 %v1013, %v1040
    %v1058 = vadd.f32 %v1014, %v1042
    %v1059 = vadd.f32 %v1015, %v1044
    %v1060 = vadd.f32 %v1016, %v1046
    %v1061 = vadd.f32 %v1017, %v1048
    %v1062 = vadd.f32 %v1018, %v1050
    %vm1063 = vcmask 46080
    %v1064 = vsel %vm1063, %v1057, 0.0
    %v1065 = vsel %vm1063, %v1058, 0.0
    %v1066 = vadd.f32 %v1064, %v1065
    %v1067 = vsel %vm1063, %v1059, 0.0
    %v1068 = vadd.f32 %v1066, %v1067
    %v1069 = vsel %vm1063, %v1060, 0.0
    %v1070 = vadd.f32 %v1068, %v1069
    %v1071 = vsel %vm1063, %v1061, 0.0
    %v1072 = vadd.f32 %v1070, %v1071
    %v1073 = vsel %vm1063, %v1062, 0.0
    %v1074 = vadd.f32 %v1072, %v1073
    %1075 = vadd.xlane.f32.xlu0 %v1074
    %v1076 = vpop.xlane.xlu0 %1075
    %v1077 = vrot.slane %v1076, 4
    %v1078 = vadd.f32 %v1076, %v1077
    %v1079 = vrot.slane %v1078, 2
    %v1080 = vadd.f32 %v1078, %v1079
    %v1081 = vrot.slane %v1080, 1
    %v1082 = vadd.f32 %v1080, %v1081
    %s1083 = vtos %v1082
    %v1084 = vmul.f32 %v1057, %v1057
    %v1085 = vmul.f32 %v1058, %v1058
    %v1086 = vmul.f32 %v1059, %v1059
    %v1087 = vmul.f32 %v1060, %v1060
    %v1088 = vmul.f32 %v1061, %v1061
    %v1089 = vmul.f32 %v1062, %v1062
    %v1090 = vsel %vm1063, %v1084, 0.0
    %v1091 = vsel %vm1063, %v1085, 0.0
    %v1092 = vadd.f32 %v1090, %v1091
    %v1093 = vsel %vm1063, %v1086, 0.0
    %v1094 = vadd.f32 %v1092, %v1093
    %v1095 = vsel %vm1063, %v1087, 0.0
    %v1096 = vadd.f32 %v1094, %v1095
    %v1097 = vsel %vm1063, %v1088, 0.0
    %v1098 = vadd.f32 %v1096, %v1097
    %v1099 = vsel %vm1063, %v1089, 0.0
    %v1100 = vadd.f32 %v1098, %v1099
    %1101 = vadd.xlane.f32.xlu0 %v1100
    %v1102 = vpop.xlane.xlu0 %1101
    %v1103 = vrot.slane %v1102, 4
    %v1104 = vadd.f32 %v1102, %v1103
    %v1105 = vrot.slane %v1104, 2
    %v1106 = vadd.f32 %v1104, %v1105
    %v1107 = vrot.slane %v1106, 1
    %v1108 = vadd.f32 %v1106, %v1107
    %s1109 = vtos %v1108
    %s1110 = smul.f32 %s1083, 0.0046296297
    %s1111 = smul.f32 %s1109, 0.0046296297
    %s1112 = smul.f32 %s1110, %s1110
    %s1113 = ssub.f32 %s1111, %s1112
    %s1114 = smax.f32 %s1113, 0.0
    %v1115 = vstv %s1110
    %v1116 = vsub.f32 %v1057, %v1115
    %v1117 = vsub.f32 %v1058, %v1115
    %v1118 = vsub.f32 %v1059, %v1115
    %v1119 = vsub.f32 %v1060, %v1115
    %v1120 = vsub.f32 %v1061, %v1115
    %v1121 = vsub.f32 %v1062, %v1115
    %s1122 = sadd.f32 %s1114, 1e-05
    %v1123 = vstv %s1122
    %v1124 = vrsqrt.pop %v1123
    %s1125 = vtos %v1124
    %v1126 = vstv %s1125
    %v1127 = vmul.f32 %v1116, %v1126
    %v1128 = vmul.f32 %v1117, %v1126
    %v1129 = vmul.f32 %v1118, %v1126
    %v1130 = vmul.f32 %v1119, %v1126
    %v1131 = vmul.f32 %v1120, %v1126
    %v1132 = vmul.f32 %v1121, %v1126
    %1133 = vst.msk [vmem:[%s2] sm:$0x3f] %vm1063, %v1127
    %1134 = vst.msk [vmem:[%s2 + $0x8] sm:$0x3f] %vm1063, %v1128
    %1135 = vst.msk [vmem:[%s2 + $0x10] sm:$0x3f] %vm1063, %v1129
    %1136 = vst.msk [vmem:[%s2 + $0x18] sm:$0x3f] %vm1063, %v1130
    %1137 = vst.msk [vmem:[%s2 + $0x20] sm:$0x3f] %vm1063, %v1131
    %1138 = vst.msk [vmem:[%s2 + $0x28] sm:$0x3f] %vm1063, %v1132
    // Predicated region
    $region14: #{conv3d_bn.1} parent=1 // pred_check
      _
    $region15: #{conv3d_bn.1} parent=1 // pred_check_branch
      %1140 = sbr.rel (0) target = $region17
    $region16: #{conv3d_bn.1} parent=1 // pred_region
      _
    $region17: #{conv3d_bn.1} parent=1 // pred_fallthru
      _
    // Predicated region
    $region18: #{conv3d_bn.1} parent=1 // pred_check
      _
    $region19: #{conv3d_bn.1} parent=1 // pred_check_branch
      %1142 = sbr.rel (0) target = $region21
    $region20: #{conv3d_bn.1} parent=1 // pred_region
      _
    $region21: #{conv3d_bn.1} parent=1 // pred_fallthru
      _
    %1143 = vsyncpa [#allocation4], 1

</llo_original>
